<compile_context>
chip_gen: v6e
topology: v6e:2x2x1
jax: 0.10.0
libtpu: 0.0.40
codegen_flags: <defaults>
</compile_context>

<pallas_src>
import jax
import jax.numpy as jnp
from jax.experimental import pallas as pl
from jax.experimental.pallas import tpu as pltpu


def _round_up(n, m):
    return ((n + m - 1) // m) * m


def _stacked_lstm_kernel(x_ref, h0_ref, c0_ref, w_ref, b_ref,
                         h_out_ref, c_out_ref, xh_ref):
    """One grid step == one LSTM layer. xh_ref carries [x | h] across layers."""
    l = pl.program_id(0)
    d_x = x_ref.shape[1]
    H = h0_ref.shape[-1]

    @pl.when(l == 0)
    def _():
        # Layer 0 consumes the external (zero-padded) input; later layers consume
        # the hidden state carried in xh_ref[:, :H].
        xh_ref[:, :d_x] = x_ref[...].astype(xh_ref.dtype)

    # This layer's previous hidden state always comes from h_0[l].
    xh_ref[:, d_x:] = h0_ref[...].astype(xh_ref.dtype)

    # Single fused contraction [x | h] @ [[W_ih]; [W_hh]] with f32 accumulation.
    gates = (jnp.dot(xh_ref[...], w_ref[...], preferred_element_type=jnp.float32)
             + b_ref[...].astype(jnp.float32))

    # i/f/o columns of W and b were pre-scaled by 0.5, so one tanh pass over the
    # full (B, 4H) tile realizes sigmoid(z) = 0.5*(tanh(z/2)+1); g is plain tanh.
    t = jnp.tanh(gates)
    i_g = 0.5 * (t[:, 0 * H:1 * H] + 1.0)
    f_g = 0.5 * (t[:, 1 * H:2 * H] + 1.0)
    g_g = t[:, 2 * H:3 * H]
    o_g = 0.5 * (t[:, 3 * H:4 * H] + 1.0)

    c_new = f_g * c0_ref[...].astype(jnp.float32) + i_g * g_g
    h_new = o_g * jnp.tanh(c_new)

    c_out_ref[...] = c_new.astype(c_out_ref.dtype)
    h_out_ref[...] = h_new.astype(h_out_ref.dtype)

    # Carry h to the next layer's x slot; columns [H, d_x) have zero weight rows
    # for layers >= 1 so stale data there is harmless.
    @pl.when(l + 1 < pl.num_programs(0))
    def _():
        # TODO(synk): training-mode dropout mask would be applied here.
        xh_ref[:, :H] = h_new.astype(xh_ref.dtype)


@jax.jit
def stacked_lstm_cell_forward(x, h_0, c_0, w_all, b_all):
    """Fused StackedLSTMCell forward (eval mode).

    x:     (B, input_size)
    h_0:   (L, B, H)     c_0: (L, B, H)
    w_all: (L, d_x + H, 4H)  stacked [W_ih; W_hh] (pre-transposed, gate-scaled)
    b_all: (L, 1, 4H)        b_ih + b_hh (gate-scaled), f32
    Returns ((h_last, c_last), (h_stack, c_stack)).
    """
    L, B, H = h_0.shape
    K = w_all.shape[1]
    d_x = K - H
    four_h = 4 * H
    b_pad = _round_up(max(B, 1), 8)          # sublane alignment
    compute_dtype = w_all.dtype
    out_dtype = x.dtype

    # Pad batch (and layer-0 input width) with zeros; slices recover exact results.
    x_p = jnp.zeros((b_pad, d_x), out_dtype).at[:B, :x.shape[1]].set(x)
    h0_p = jnp.zeros((L, b_pad, H), out_dtype).at[:, :B, :].set(h_0)
    c0_p = jnp.zeros((L, b_pad, H), out_dtype).at[:, :B, :].set(c_0)

    itemsize = jnp.dtype(compute_dtype).itemsize
    cost = pl.CostEstimate(
        flops=2 * L * b_pad * K * four_h,
        transcendentals=L * b_pad * 5 * H,
        bytes_accessed=(w_all.size * itemsize + b_all.size * 4
                        + (x_p.size + 2 * h0_p.size + 2 * L * b_pad * H) * 4),
    )

    grid_spec = pltpu.PrefetchScalarGridSpec(
        num_scalar_prefetch=0,
        grid=(L,),
        in_specs=[
            pl.BlockSpec((b_pad, d_x), lambda l: (0, 0)),          # x (VMEM-resident)
            pl.BlockSpec((None, b_pad, H), lambda l: (l, 0, 0)),   # h_0[l]
            pl.BlockSpec((None, b_pad, H), lambda l: (l, 0, 0)),   # c_0[l]
            pl.BlockSpec((None, K, four_h), lambda l: (l, 0, 0)),  # W[l] (double-buffered)
            pl.BlockSpec((None, 1, four_h), lambda l: (l, 0, 0)),  # b[l]
        ],
        out_specs=(
            pl.BlockSpec((None, b_pad, H), lambda l: (l, 0, 0)),   # h_out[l]
            pl.BlockSpec((None, b_pad, H), lambda l: (l, 0, 0)),   # c_out[l]
        ),
        scratch_shapes=[pltpu.VMEM((b_pad, K), compute_dtype)],    # [x | h] carry
    )

    h_out, c_out = pl.pallas_call(
        _stacked_lstm_kernel,
        out_shape=(jax.ShapeDtypeStruct((L, b_pad, H), out_dtype),
                   jax.ShapeDtypeStruct((L, b_pad, H), out_dtype)),
        grid_spec=grid_spec,
        compiler_params=pltpu.CompilerParams(
            dimension_semantics=("arbitrary",),        # layer axis carries a dependency
            vmem_limit_bytes=64 * 1024 * 1024,         # raised limit; <= v7x physical
        ),
        cost_estimate=cost,
        input_output_aliases={1: 0, 2: 1},             # reuse h_0/c_0 HBM for new states
    )(x_p, h0_p, c0_p, w_all, b_all)

    h_stack = h_out[:, :B, :]
    c_stack = c_out[:, :B, :]
    return (h_stack[-1], c_stack[-1]), (h_stack, c_stack)


def prep_params(raw_params, rnn_size, compute_dtype=jnp.float32):
    """Stack PyTorch-style per-layer (w_ih, w_hh, b_ih, b_hh) into kernel layout.

    Weights are pre-transposed to (in, 4H), zero-padded into a common (d_x + H, 4H)
    slab, and the i/f/o gate columns of W and b are pre-scaled by 0.5 so the kernel
    only needs a single tanh pass (0.5 scaling is exact in floating point).
    """
    H = rnn_size
    in_sizes = [w_ih.shape[1] for (w_ih, _, _, _) in raw_params]
    d_x = _round_up(max(max(in_sizes), H), 128)        # lane-aligned concat boundary
    K = d_x + H
    L = len(raw_params)

    col_scale = jnp.concatenate([jnp.full((H,), 0.5), jnp.full((H,), 0.5),
                                 jnp.ones((H,)), jnp.full((H,), 0.5)]).astype(jnp.float32)

    w_all = jnp.zeros((L, K, 4 * H), jnp.float32)
    b_all = jnp.zeros((L, 1, 4 * H), jnp.float32)
    for l, (w_ih, w_hh, b_ih, b_hh) in enumerate(raw_params):
        in_l = w_ih.shape[1]
        w_all = w_all.at[l, :in_l, :].set(w_ih.T.astype(jnp.float32) * col_scale)
        w_all = w_all.at[l, d_x:, :].set(w_hh.T.astype(jnp.float32) * col_scale)
        b_all = b_all.at[l, 0, :].set((b_ih + b_hh).astype(jnp.float32) * col_scale)
    # bf16 weights halve HBM weight traffic; biases stay f32 (added post-accumulate).
    return w_all.astype(compute_dtype), b_all


def make_raw_params(key, num_layers, input_size, rnn_size, dtype=jnp.float32):
    """Deterministic PyTorch-style LSTMCell init: U(-1/sqrt(H), 1/sqrt(H))."""
    params = []
    bound = 1.0 / (rnn_size ** 0.5)
    in_sz = input_size
    for _ in range(num_layers):
        key, k1, k2, k3, k4 = jax.random.split(key, 5)
        w_ih = jax.random.uniform(k1, (4 * rnn_size, in_sz), dtype, -bound, bound)
        w_hh = jax.random.uniform(k2, (4 * rnn_size, rnn_size), dtype, -bound, bound)
        b_ih = jax.random.uniform(k3, (4 * rnn_size,), dtype, -bound, bound)
        b_hh = jax.random.uniform(k4, (4 * rnn_size,), dtype, -bound, bound)
        params.append((w_ih, w_hh, b_ih, b_hh))
        in_sz = rnn_size
    return params


def _reference_forward(x, h_0, c_0, raw_params):
    """Pure-JAX replica of the PyTorch StackedLSTMCell (eval mode)."""
    H = h_0.shape[-1]
    h_list, c_list = [], []
    for i, (w_ih, w_hh, b_ih, b_hh) in enumerate(raw_params):
        gates = x @ w_ih.T + b_ih + h_0[i] @ w_hh.T + b_hh
        i_g = jax.nn.sigmoid(gates[:, :H])
        f_g = jax.nn.sigmoid(gates[:, H:2 * H])
        g_g = jnp.tanh(gates[:, 2 * H:3 * H])
        o_g = jax.nn.sigmoid(gates[:, 3 * H:])
        c_i = f_g * c_0[i] + i_g * g_g
        h_i = o_g * jnp.tanh(c_i)
        x = h_i
        h_list.append(h_i)
        c_list.append(c_i)
    return (h_list[-1], c_list[-1]), (jnp.stack(h_list), jnp.stack(c_list))


if __name__ == "__main__":
    num_layers = 2
    batch = 2
    input_size = 32
    rnn_size = 32

    key = jax.random.PRNGKey(0)
    kx, kh, kc, kp = jax.random.split(key, 4)
    x = jax.random.normal(kx, (batch, input_size), jnp.float32)
    h_0 = jax.random.normal(kh, (num_layers, batch, rnn_size), jnp.float32)
    c_0 = jax.random.normal(kc, (num_layers, batch, rnn_size), jnp.float32)
    raw_params = make_raw_params(kp, num_layers, input_size, rnn_size)

    (rh_last, rc_last), (rh_stack, rc_stack) = _reference_forward(x, h_0, c_0, raw_params)

    # --- f32 weight path: tight correctness check ---------------------------------
    w_all, b_all = prep_params(raw_params, rnn_size, compute_dtype=jnp.float32)
    (h_last, c_last), (h_stack, c_stack) = stacked_lstm_cell_forward(x, h_0, c_0, w_all, b_all)
    jax.block_until_ready((h_last, c_last, h_stack, c_stack))

    assert h_stack.shape == (num_layers, batch, rnn_size)
    assert c_stack.shape == (num_layers, batch, rnn_size)
    assert jnp.allclose(h_stack, rh_stack, atol=1e-4, rtol=1e-4)
    assert jnp.allclose(c_stack, rc_stack, atol=1e-4, rtol=1e-4)
    assert jnp.array_equal(h_last, h_stack[-1]) and jnp.array_equal(c_last, c_stack[-1])

    # --- bf16 weight/activation path (bandwidth-optimized): looser check ----------
    w_bf16, b_bf16 = prep_params(raw_params, rnn_size, compute_dtype=jnp.bfloat16)
    (_, _), (h_bf16, c_bf16) = stacked_lstm_cell_forward(x, h_0, c_0, w_bf16, b_bf16)
    jax.block_until_ready((h_bf16, c_bf16))
    assert jnp.allclose(h_bf16, rh_stack, atol=1e-1, rtol=1e-1)
    assert jnp.allclose(c_bf16, rc_stack, atol=1e-1, rtol=1e-1)

    print("KERNEL_OK")
</pallas_src>

<mosaic_0001>
module attributes {stable_mosaic.version = 11 : i64} {
  func.func @_stacked_lstm_kernel(%arg0: i32, %arg1: memref<8x128xf32, #tpu.memory_space<vmem>>, %arg2: memref<1x8x32xf32, #tpu.memory_space<vmem>>, %arg3: memref<1x8x32xf32, #tpu.memory_space<vmem>>, %arg4: memref<1x160x128xf32, #tpu.memory_space<vmem>>, %arg5: memref<1x1x128xf32, #tpu.memory_space<vmem>>, %arg6: memref<1x8x32xf32, #tpu.memory_space<vmem>>, %arg7: memref<1x8x32xf32, #tpu.memory_space<vmem>>, %arg8: memref<8x160xf32, #tpu.memory_space<vmem>>) attributes {dimension_semantics = [#tpu.dimension_semantics<arbitrary>], iteration_bounds = array<i64: 2>, scalar_prefetch = 0 : i64, scratch_operands = 1 : i64, tpu.core_type = #tpu.core_type<tc>, window_params = [{pipeline_mode = #tpu.pipeline_mode<synchronous>, transform_indices = @transform_0, window_bounds = array<i64: 8, 128>}, {transform_indices = @transform_1, window_bounds = array<i64: 1, 8, 32>}, {transform_indices = @transform_2, window_bounds = array<i64: 1, 8, 32>}, {transform_indices = @transform_3, window_bounds = array<i64: 1, 160, 128>}, {transform_indices = @transform_4, window_bounds = array<i64: 1, 1, 128>}, {transform_indices = @transform_5, window_bounds = array<i64: 1, 8, 32>}, {transform_indices = @transform_6, window_bounds = array<i64: 1, 8, 32>}]} {
    %c0_i32 = arith.constant 0 : i32
    %0 = arith.cmpi eq, %arg0, %c0_i32 : i32
    %1 = arith.extui %0 : i1 to i32
    %c0_i32_0 = arith.constant 0 : i32
    %2 = arith.cmpi ne, %1, %c0_i32_0 : i32
    scf.if %2 {
      %c0_28 = arith.constant 0 : index
      %c0_29 = arith.constant 0 : index
      %48 = vector.load %arg1[%c0_28, %c0_29] : memref<8x128xf32, #tpu.memory_space<vmem>>, vector<8x128xf32>
      %c0_30 = arith.constant 0 : index
      %c0_31 = arith.constant 0 : index
      %49 = vector.load %arg8[%c0_30, %c0_31] : memref<8x160xf32, #tpu.memory_space<vmem>>, vector<8x128xf32>
      tpu.vector_store %arg8[%c0_30, %c0_31], %48 {strides = array<i32>} : memref<8x160xf32, #tpu.memory_space<vmem>>, vector<8x128xf32>,
    } else {
    }
    %c0 = arith.constant 0 : index
    %c0_1 = arith.constant 0 : index
    %c0_2 = arith.constant 0 : index
    %3 = vector.load %arg2[%c0, %c0_1, %c0_2] : memref<1x8x32xf32, #tpu.memory_space<vmem>>, vector<1x8x32xf32>
    %4 = vector.shape_cast %3 : vector<1x8x32xf32> to vector<8x32xf32>
    %c0_3 = arith.constant 0 : index
    %c128 = arith.constant 128 : index
    %5 = vector.load %arg8[%c0_3, %c128] : memref<8x160xf32, #tpu.memory_space<vmem>>, vector<8x32xf32>
    tpu.vector_store %arg8[%c0_3, %c128], %4 {strides = array<i32>} : memref<8x160xf32, #tpu.memory_space<vmem>>, vector<8x32xf32>,
    %c0_4 = arith.constant 0 : index
    %c0_5 = arith.constant 0 : index
    %6 = vector.load %arg8[%c0_4, %c0_5] : memref<8x160xf32, #tpu.memory_space<vmem>>, vector<8x160xf32>
    %c0_6 = arith.constant 0 : index
    %c0_7 = arith.constant 0 : index
    %c0_8 = arith.constant 0 : index
    %7 = vector.load %arg4[%c0_6, %c0_7, %c0_8] : memref<1x160x128xf32, #tpu.memory_space<vmem>>, vector<1x160x128xf32>
    %8 = vector.shape_cast %7 : vector<1x160x128xf32> to vector<160x128xf32>
    %cst = arith.constant dense<0.000000e+00> : vector<8x128xf32>
    %9 = tpu.matmul %6, %8, %cst {dimension_numbers = #tpu.dot_dimension_numbers<[1], [0], [0], [1], [0, 0, 1, 1], [], []>} : vector<8x160xf32>, vector<160x128xf32>, vector<8x128xf32> -> vector<8x128xf32>
    %c0_9 = arith.constant 0 : index
    %c0_10 = arith.constant 0 : index
    %c0_11 = arith.constant 0 : index
    %10 = vector.load %arg5[%c0_9, %c0_10, %c0_11] : memref<1x1x128xf32, #tpu.memory_space<vmem>>, vector<1x1x128xf32>
    %11 = vector.shape_cast %10 : vector<1x1x128xf32> to vector<1x128xf32>
    %12 = vector.broadcast %11 : vector<1x128xf32> to vector<8x128xf32>
    %13 = arith.addf %9, %12 : vector<8x128xf32>
    %14 = math.tanh %13 : vector<8x128xf32>
    %15 = vector.extract_strided_slice %14 {offsets = [0, 0], sizes = [8, 32], strides = [1, 1]} : vector<8x128xf32> to vector<8x32xf32>
    %cst_12 = arith.constant 1.000000e+00 : f32
    %16 = vector.broadcast %cst_12 : f32 to vector<8x32xf32>
    %17 = arith.addf %15, %16 : vector<8x32xf32>
    %cst_13 = arith.constant 5.000000e-01 : f32
    %18 = vector.broadcast %cst_13 : f32 to vector<8x32xf32>
    %19 = arith.mulf %18, %17 : vector<8x32xf32>
    %20 = vector.extract_strided_slice %14 {offsets = [0, 32], sizes = [8, 32], strides = [1, 1]} : vector<8x128xf32> to vector<8x32xf32>
    %cst_14 = arith.constant 1.000000e+00 : f32
    %21 = vector.broadcast %cst_14 : f32 to vector<8x32xf32>
    %22 = arith.addf %20, %21 : vector<8x32xf32>
    %cst_15 = arith.constant 5.000000e-01 : f32
    %23 = vector.broadcast %cst_15 : f32 to vector<8x32xf32>
    %24 = arith.mulf %23, %22 : vector<8x32xf32>
    %25 = vector.extract_strided_slice %14 {offsets = [0, 64], sizes = [8, 32], strides = [1, 1]} : vector<8x128xf32> to vector<8x32xf32>
    %26 = vector.extract_strided_slice %14 {offsets = [0, 96], sizes = [8, 32], strides = [1, 1]} : vector<8x128xf32> to vector<8x32xf32>
    %cst_16 = arith.constant 1.000000e+00 : f32
    %27 = vector.broadcast %cst_16 : f32 to vector<8x32xf32>
    %28 = arith.addf %26, %27 : vector<8x32xf32>
    %cst_17 = arith.constant 5.000000e-01 : f32
    %29 = vector.broadcast %cst_17 : f32 to vector<8x32xf32>
    %30 = arith.mulf %29, %28 : vector<8x32xf32>
    %c0_18 = arith.constant 0 : index
    %c0_19 = arith.constant 0 : index
    %c0_20 = arith.constant 0 : index
    %31 = vector.load %arg3[%c0_18, %c0_19, %c0_20] : memref<1x8x32xf32, #tpu.memory_space<vmem>>, vector<1x8x32xf32>
    %32 = vector.shape_cast %31 : vector<1x8x32xf32> to vector<8x32xf32>
    %33 = arith.mulf %24, %32 : vector<8x32xf32>
    %34 = arith.mulf %19, %25 : vector<8x32xf32>
    %35 = arith.addf %33, %34 : vector<8x32xf32>
    %36 = math.tanh %35 : vector<8x32xf32>
    %37 = arith.mulf %30, %36 : vector<8x32xf32>
    %c0_21 = arith.constant 0 : index
    %c0_22 = arith.constant 0 : index
    %c0_23 = arith.constant 0 : index
    %38 = vector.load %arg7[%c0_21, %c0_22, %c0_23] : memref<1x8x32xf32, #tpu.memory_space<vmem>>, vector<1x8x32xf32>
    %39 = vector.shape_cast %38 : vector<1x8x32xf32> to vector<8x32xf32>
    %40 = vector.shape_cast %35 : vector<8x32xf32> to vector<1x8x32xf32>
    tpu.vector_store %arg7[%c0_21, %c0_22, %c0_23], %40 {strides = array<i32>} : memref<1x8x32xf32, #tpu.memory_space<vmem>>, vector<1x8x32xf32>,
    %c0_24 = arith.constant 0 : index
    %c0_25 = arith.constant 0 : index
    %c0_26 = arith.constant 0 : index
    %41 = vector.load %arg6[%c0_24, %c0_25, %c0_26] : memref<1x8x32xf32, #tpu.memory_space<vmem>>, vector<1x8x32xf32>
    %42 = vector.shape_cast %41 : vector<1x8x32xf32> to vector<8x32xf32>
    %43 = vector.shape_cast %37 : vector<8x32xf32> to vector<1x8x32xf32>
    tpu.vector_store %arg6[%c0_24, %c0_25, %c0_26], %43 {strides = array<i32>} : memref<1x8x32xf32, #tpu.memory_space<vmem>>, vector<1x8x32xf32>,
    %c1_i32 = arith.constant 1 : i32
    %44 = arith.addi %arg0, %c1_i32 : i32
    %c2_i32 = arith.constant 2 : i32
    %45 = arith.cmpi slt, %44, %c2_i32 : i32
    %46 = arith.extui %45 : i1 to i32
    %c0_i32_27 = arith.constant 0 : i32
    %47 = arith.cmpi ne, %46, %c0_i32_27 : i32
    scf.if %47 {
      %c0_28 = arith.constant 0 : index
      %c0_29 = arith.constant 0 : index
      %48 = vector.load %arg8[%c0_28, %c0_29] : memref<8x160xf32, #tpu.memory_space<vmem>>, vector<8x32xf32>
      tpu.vector_store %arg8[%c0_28, %c0_29], %37 {strides = array<i32>} : memref<8x160xf32, #tpu.memory_space<vmem>>, vector<8x32xf32>,
    } else {
    }
    return
  }
  func.func @transform_0(%arg0: i32) -> (i32, i32) {
    %c0_i32 = arith.constant 0 : i32
    %c0_i32_0 = arith.constant 0 : i32
    %c0_i32_1 = arith.constant 0 : i32
    return %c0_i32, %c0_i32_0 : i32, i32
  }
  func.func @transform_1(%arg0: i32) -> (i32, i32, i32) {
    %c0_i32 = arith.constant 0 : i32
    %c0_i32_0 = arith.constant 0 : i32
    %c0_i32_1 = arith.constant 0 : i32
    return %arg0, %c0_i32, %c0_i32_0 : i32, i32, i32
  }
  func.func @transform_2(%arg0: i32) -> (i32, i32, i32) {
    %c0_i32 = arith.constant 0 : i32
    %c0_i32_0 = arith.constant 0 : i32
    %c0_i32_1 = arith.constant 0 : i32
    return %arg0, %c0_i32, %c0_i32_0 : i32, i32, i32
  }
  func.func @transform_3(%arg0: i32) -> (i32, i32, i32) {
    %c0_i32 = arith.constant 0 : i32
    %c0_i32_0 = arith.constant 0 : i32
    %c0_i32_1 = arith.constant 0 : i32
    return %arg0, %c0_i32, %c0_i32_0 : i32, i32, i32
  }
  func.func @transform_4(%arg0: i32) -> (i32, i32, i32) {
    %c0_i32 = arith.constant 0 : i32
    %c0_i32_0 = arith.constant 0 : i32
    %c0_i32_1 = arith.constant 0 : i32
    return %arg0, %c0_i32, %c0_i32_0 : i32, i32, i32
  }
  func.func @transform_5(%arg0: i32) -> (i32, i32, i32) {
    %c0_i32 = arith.constant 0 : i32
    %c0_i32_0 = arith.constant 0 : i32
    %c0_i32_1 = arith.constant 0 : i32
    return %arg0, %c0_i32, %c0_i32_0 : i32, i32, i32
  }
  func.func @transform_6(%arg0: i32) -> (i32, i32, i32) {
    %c0_i32 = arith.constant 0 : i32
    %c0_i32_0 = arith.constant 0 : i32
    %c0_i32_1 = arith.constant 0 : i32
    return %arg0, %c0_i32, %c0_i32_0 : i32, i32, i32
  }
}

</mosaic_0001>

<llo_original>
// kernel: stacked_lstm_cell_forward.1
$region0: #{stacked_lstm_cell_forward.1}
  #allocation0 [shape = 'u32[]', space=smem, size = 0x4, offset = 0x4, fixed_abs, tag = 'smem constant byte address 0x4 - core index']
  #allocation1 [shape = 'u32[144,128]{1,0:T(1,128)}', space=vmem, size = 0x12000, scoped, tag = 'internal scratch']
  #allocation2 [shape = 'f32[8,160]{1,0:T(8,128)}', space=vmem, size = 0x2000, scoped, tag = 'scratch operand']
  %s0 = inlined_call_operand.vmem [shape: f32[8,128], index: 0, kind: input, shape index: {}]
  %s1 = inlined_call_operand.vmem [shape: f32[2,8,32], index: 1, kind: input, shape index: {}, may-alias: {1,5}]
  %s2 = inlined_call_operand.vmem [shape: f32[2,8,32], index: 2, kind: input, shape index: {}, may-alias: {2,6}]
  %s3 = inlined_call_operand.hbm [shape: f32[2,160,128], index: 3, kind: input, shape index: {}]
  %s4 = inlined_call_operand.vmem [shape: f32[2,1,128], index: 4, kind: input, shape index: {}]
  %s5 = inlined_call_operand.vmem [shape: f32[2,8,32], index: 5, kind: output, shape index: {0}, may-alias: {1,5}]
  %s6 = inlined_call_operand.vmem [shape: f32[2,8,32], index: 6, kind: output, shape index: {1}, may-alias: {2,6}]
  %7 = xla_tuple %s5, %s6
  %s8 = sld [smem:[#allocation0]]
  $region73: #{stacked_lstm_cell_forward.1} parent=0
    _
  %s10 = ssub.s32 1, %s8
  %s11 = scalar_select 0, %s10, %s8
  $region1: #{stacked_lstm_cell_forward.1} parent=0
    #allocation3 [shape = 'u8[163840]{0}', space=vmem, size = 0x28000, scoped, tag = 'input window, operand 3']
    #allocation4 [shape = 's32[2]{0}', space=sflag, size = 0x8, scoped, tag = 'scoped memory for stacked_lstm_cell_forward.1']
    %12 = vsyncpa [#allocation4], 0
    %s13 = scalar_lea.sflag [#allocation4], 1
    %14 = vsyncpa %s13, 0
    loop: start=0, step=1, limit=4
    $region2: #{stacked_lstm_cell_forward.1} parent=1 // loop_pre_header
      _
    $region3: #{stacked_lstm_cell_forward.1} parent=1 // loop_header
      %s16 = sphi 0, %s20
      %p17 = scmp.ge.s32.totalorder %s16, 4
      %s24 = sphi 0, %s24
      %s26 = sphi 0, %s24
      %s27 = sphi 0, %s26
      %s41 = sphi 0, %s27
      %s47 = sphi 0, %s49
      %s50 = sphi 0, %s47
      %s51 = sphi 0, %s50
      %s67 = sphi 0, %s51
      %s73 = sphi 0, %s75
      %s76 = sphi 0, %s73
      %s77 = sphi 0, %s76
      %s93 = sphi 0, %s77
      %s99 = sphi 0, %s101
      %s102 = sphi 0, %s99
      %s103 = sphi 0, %s102
      %s119 = sphi 0, %s103
      %s125 = sphi 0, %s127
      %s128 = sphi 0, %s125
      %s129 = sphi 0, %s128
      %s145 = sphi 0, %s129
      %s151 = sphi 0, %s153
      %s154 = sphi 0, %s151
      %s155 = sphi 0, %s154
      %s171 = sphi 0, %s155
      %s177 = sphi 0, %s179
      %s180 = sphi 0, %s177
      %s181 = sphi 0, %s180
      %s197 = sphi 0, %s181
    $region4: #{stacked_lstm_cell_forward.1} parent=1 // loop_header_branch
      %19 = sbr.rel (%p17) target = $region8
    $region5: #{stacked_lstm_cell_forward.1} parent=1 // loop_body
      %s21 = ssub.s32 %s16, 1
      %s22 = ssub.s32 %s16, 2
      %s23 = sadd.s32 %s16, 1
      %s25 = sadd.s32 %s24, 1
      %p28 = scmp.eq.s32.totalorder %s16, 1
      %p29 = scmp.ne.s32.totalorder %s24, %s26
      %p30 = scmp.eq.s32.totalorder %s16, 0
      %p31 = por %p29, %p30
      %p32 = scmp.ne.s32.totalorder %s24, %s26
      %p33 = scmp.eq.s32.totalorder %s21, 1
      %p34 = por %p32, %p33
      %p35 = scmp.ne.s32.totalorder %s26, %s27
      %p36 = scmp.eq.s32.totalorder %s21, 0
      %p37 = por %p35, %p36
      %p38 = scmp.ne.s32.totalorder %s26, %s27
      %p39 = scmp.eq.s32.totalorder %s22, 1
      %p40 = por %p38, %p39
      %p42 = scmp.ne.s32.totalorder %s27, %s41
      %p43 = scmp.eq.s32.totalorder %s22, 0
      %p44 = por %p42, %p43
      %s45 = ssub.s32 %s16, %s23
      %p46 = scmp.eq.s32.totalorder %s45, 0
      %s48 = sadd.s32 %s47, 1
      %s49 = scalar_select %p46, %s47, %s48
      %p52 = pneg %p46
      %p53 = scmp.eq.s32.totalorder %s16, 1
      %p54 = por %p52, %p53
      %p55 = scmp.ne.s32.totalorder %s47, %s50
      %p56 = scmp.eq.s32.totalorder %s16, 0
      %p57 = por %p55, %p56
      %p58 = scmp.ne.s32.totalorder %s47, %s50
      %p59 = scmp.eq.s32.totalorder %s21, 1
      %p60 = por %p58, %p59
      %p61 = scmp.ne.s32.totalorder %s50, %s51
      %p62 = scmp.eq.s32.totalorder %s21, 0
      %p63 = por %p61, %p62
      %p64 = scmp.ne.s32.totalorder %s50, %s51
      %p65 = scmp.eq.s32.totalorder %s22, 1
      %p66 = por %p64, %p65
      %p68 = scmp.ne.s32.totalorder %s51, %s67
      %p69 = scmp.eq.s32.totalorder %s22, 0
      %p70 = por %p68, %p69
      %s71 = ssub.s32 %s16, %s23
      %p72 = scmp.eq.s32.totalorder %s71, 0
      %s74 = sadd.s32 %s73, 1
      %s75 = scalar_select %p72, %s73, %s74
      %p78 = pneg %p72
      %p79 = scmp.eq.s32.totalorder %s16, 1
      %p80 = por %p78, %p79
      %p81 = scmp.ne.s32.totalorder %s73, %s76
      %p82 = scmp.eq.s32.totalorder %s16, 0
      %p83 = por %p81, %p82
      %p84 = scmp.ne.s32.totalorder %s73, %s76
      %p85 = scmp.eq.s32.totalorder %s21, 1
      %p86 = por %p84, %p85
      %p87 = scmp.ne.s32.totalorder %s76, %s77
      %p88 = scmp.eq.s32.totalorder %s21, 0
      %p89 = por %p87, %p88
      %p90 = scmp.ne.s32.totalorder %s76, %s77
      %p91 = scmp.eq.s32.totalorder %s22, 1
      %p92 = por %p90, %p91
      %p94 = scmp.ne.s32.totalorder %s77, %s93
      %p95 = scmp.eq.s32.totalorder %s22, 0
      %p96 = por %p94, %p95
      %s97 = ssub.s32 %s16, %s23
      %p98 = scmp.eq.s32.totalorder %s97, 0
      %s100 = sadd.s32 %s99, 1
      %s101 = scalar_select %p98, %s99, %s100
      %p104 = pneg %p98
      %p105 = scmp.eq.s32.totalorder %s16, 1
      %p106 = por %p104, %p105
      %p107 = scmp.ne.s32.totalorder %s99, %s102
      %p108 = scmp.eq.s32.totalorder %s16, 0
      %p109 = por %p107, %p108
      %p110 = scmp.ne.s32.totalorder %s99, %s102
      %p111 = scmp.eq.s32.totalorder %s21, 1
      %p112 = por %p110, %p111
      %p113 = scmp.ne.s32.totalorder %s102, %s103
      %p114 = scmp.eq.s32.totalorder %s21, 0
      %p115 = por %p113, %p114
      %p116 = scmp.ne.s32.totalorder %s102, %s103
      %p117 = scmp.eq.s32.totalorder %s22, 1
      %p118 = por %p116, %p117
      %p120 = scmp.ne.s32.totalorder %s103, %s119
      %p121 = scmp.eq.s32.totalorder %s22, 0
      %p122 = por %p120, %p121
      %s123 = ssub.s32 %s16, %s23
      %p124 = scmp.eq.s32.totalorder %s123, 0
      %s126 = sadd.s32 %s125, 1
      %s127 = scalar_select %p124, %s125, %s126
      %p130 = pneg %p124
      %p131 = scmp.eq.s32.totalorder %s16, 1
      %p132 = por %p130, %p131
      %p133 = scmp.ne.s32.totalorder %s125, %s128
      %p134 = scmp.eq.s32.totalorder %s16, 0
      %p135 = por %p133, %p134
      %p136 = scmp.ne.s32.totalorder %s125, %s128
      %p137 = scmp.eq.s32.totalorder %s21, 1
      %p138 = por %p136, %p137
      %p139 = scmp.ne.s32.totalorder %s128, %s129
      %p140 = scmp.eq.s32.totalorder %s21, 0
      %p141 = por %p139, %p140
      %p142 = scmp.ne.s32.totalorder %s128, %s129
      %p143 = scmp.eq.s32.totalorder %s22, 1
      %p144 = por %p142, %p143
      %p146 = scmp.ne.s32.totalorder %s129, %s145
      %p147 = scmp.eq.s32.totalorder %s22, 0
      %p148 = por %p146, %p147
      %s149 = ssub.s32 %s16, %s23
      %p150 = scmp.eq.s32.totalorder %s149, 0
      %s152 = sadd.s32 %s151, 1
      %s153 = scalar_select %p150, %s151, %s152
      %p156 = pneg %p150
      %p157 = scmp.eq.s32.totalorder %s16, 1
      %p158 = por %p156, %p157
      %p159 = scmp.ne.s32.totalorder %s151, %s154
      %p160 = scmp.eq.s32.totalorder %s16, 0
      %p161 = por %p159, %p160
      %p162 = scmp.ne.s32.totalorder %s151, %s154
      %p163 = scmp.eq.s32.totalorder %s21, 1
      %p164 = por %p162, %p163
      %p165 = scmp.ne.s32.totalorder %s154, %s155
      %p166 = scmp.eq.s32.totalorder %s21, 0
      %p167 = por %p165, %p166
      %p168 = scmp.ne.s32.totalorder %s154, %s155
      %p169 = scmp.eq.s32.totalorder %s22, 1
      %p170 = por %p168, %p169
      %p172 = scmp.ne.s32.totalorder %s155, %s171
      %p173 = scmp.eq.s32.totalorder %s22, 0
      %p174 = por %p172, %p173
      %s175 = ssub.s32 %s16, %s23
      %p176 = scmp.eq.s32.totalorder %s175, 0
      %s178 = sadd.s32 %s177, 1
      %s179 = scalar_select %p176, %s177, %s178
      %p182 = pneg %p176
      %p183 = scmp.eq.s32.totalorder %s16, 1
      %p184 = por %p182, %p183
      %p185 = scmp.ne.s32.totalorder %s177, %s180
      %p186 = scmp.eq.s32.totalorder %s16, 0
      %p187 = por %p185, %p186
      %p188 = scmp.ne.s32.totalorder %s177, %s180
      %p189 = scmp.eq.s32.totalorder %s21, 1
      %p190 = por %p188, %p189
      %p191 = scmp.ne.s32.totalorder %s180, %s181
      %p192 = scmp.eq.s32.totalorder %s21, 0
      %p193 = por %p191, %p192
      %p194 = scmp.ne.s32.totalorder %s180, %s181
      %p195 = scmp.eq.s32.totalorder %s22, 1
      %p196 = por %p194, %p195
      %p198 = scmp.ne.s32.totalorder %s181, %s197
      %p199 = scmp.eq.s32.totalorder %s22, 0
      %p200 = por %p198, %p199
      %p201 = scmp.le.s32.totalorder 1, %s16
      %p202 = scmp.lt.s32.totalorder %s16, 3
      %p203 = pnand %p201, %p202
      %p204 = pneg %p203
      // Predicated region
      $region9: #{stacked_lstm_cell_forward.1} parent=5 // pred_check
        _
      $region10: #{stacked_lstm_cell_forward.1} parent=5 // pred_check_branch
        %206 = sbr.rel (%p203) target = $region12
      $region11: #{stacked_lstm_cell_forward.1} parent=5 // pred_region
        %s207 = ssub.s32 %s16, 1
        // Predicated region
        $region13: #{stacked_lstm_cell_forward.1} parent=11 // pred_check
          %p208 = pneg %p37
        $region14: #{stacked_lstm_cell_forward.1} parent=11 // pred_check_branch
          %210 = sbr.rel (%p208) target = $region16
        $region15: #{stacked_lstm_cell_forward.1} parent=11 // pred_region
          _
        $region16: #{stacked_lstm_cell_forward.1} parent=11 // pred_fallthru
          _
      $region12: #{stacked_lstm_cell_forward.1} parent=5 // pred_fallthru
        _
      %p211 = scmp.lt.s32.totalorder %s16, 2
      // Predicated region
      $region17: #{stacked_lstm_cell_forward.1} parent=5 // pred_check
        %p212 = pneg %p211
      $region18: #{stacked_lstm_cell_forward.1} parent=5 // pred_check_branch
        %214 = sbr.rel (%p212) target = $region20
      $region19: #{stacked_lstm_cell_forward.1} parent=5 // pred_region
        // Predicated region
        $region21: #{stacked_lstm_cell_forward.1} parent=19 // pred_check
          %p215 = pneg %p57
        $region22: #{stacked_lstm_cell_forward.1} parent=19 // pred_check_branch
          %217 = sbr.rel (%p215) target = $region24
        $region23: #{stacked_lstm_cell_forward.1} parent=19 // pred_region
          %p218 = scmp.lt.s32.totalorder %s16, 1
          %s219 = scalar_select %p218, %s16, 1
          %s220 = smul.addr %s219, 8
          %s221 = scalar_lea.vmem %s1, %s220
        $region24: #{stacked_lstm_cell_forward.1} parent=19 // pred_fallthru
          _
        // Predicated region
        $region25: #{stacked_lstm_cell_forward.1} parent=19 // pred_check
          %p222 = pneg %p83
        $region26: #{stacked_lstm_cell_forward.1} parent=19 // pred_check_branch
          %224 = sbr.rel (%p222) target = $region28
        $region27: #{stacked_lstm_cell_forward.1} parent=19 // pred_region
          %p225 = scmp.lt.s32.totalorder %s16, 1
          %s226 = scalar_select %p225, %s16, 1
          %s227 = smul.addr %s226, 8
          %s228 = scalar_lea.vmem %s2, %s227
        $region28: #{stacked_lstm_cell_forward.1} parent=19 // pred_fallthru
          _
        // Predicated region
        $region29: #{stacked_lstm_cell_forward.1} parent=19 // pred_check
          %p229 = pneg %p109
        $region30: #{stacked_lstm_cell_forward.1} parent=19 // pred_check_branch
          %231 = sbr.rel (%p229) target = $region32
        $region31: #{stacked_lstm_cell_forward.1} parent=19 // pred_region
          %s232 = sand.u32 %s99, 1
          %s233 = scalar_lea.sflag [#allocation4], %s232
          %s234 = sand.u32 %s99, 1
          %s235 = smul.addr %s234, 160
          %s236 = scalar_lea.vmem [#allocation3], %s235
          %s238 = ssub.s32 2560, 2560
          %239 = vsyncadd %s233, %s238
          %s240 = smul.addr %s16, 20
          %s241 = smul.addr %s240, 128
          %s242 = scalar_lea.hbm %s3, %s241
          %s243 = sshll.u32 %s236, 4
          %s244 = int_to_ptr.vmem [resolvable:$true] %s243
          %249 = dma.hbm_to_vmem [thread:$0]  %s242, 2560, %s244, %s233, 128, 128, 8
        $region32: #{stacked_lstm_cell_forward.1} parent=19 // pred_fallthru
          _
        // Predicated region
        $region33: #{stacked_lstm_cell_forward.1} parent=19 // pred_check
          %p250 = pneg %p135
        $region34: #{stacked_lstm_cell_forward.1} parent=19 // pred_check_branch
          %252 = sbr.rel (%p250) target = $region36
        $region35: #{stacked_lstm_cell_forward.1} parent=19 // pred_region
          %p253 = scmp.lt.s32.totalorder %s16, 1
          %s254 = scalar_select %p253, %s16, 1
          %s255 = scalar_lea.vmem %s4, %s254
        $region36: #{stacked_lstm_cell_forward.1} parent=19 // pred_fallthru
          _
      $region20: #{stacked_lstm_cell_forward.1} parent=5 // pred_fallthru
        _
      %p256 = scmp.le.s32.totalorder 1, %s16
      %p257 = scmp.lt.s32.totalorder %s16, 3
      %p258 = pnand %p256, %p257
      %p259 = pneg %p258
      // Predicated region
      $region37: #{stacked_lstm_cell_forward.1} parent=5 // pred_check
        _
      $region38: #{stacked_lstm_cell_forward.1} parent=5 // pred_check_branch
        %261 = sbr.rel (%p258) target = $region40
      $region39: #{stacked_lstm_cell_forward.1} parent=5 // pred_region
        %s262 = ssub.s32 %s16, 1
        %s263 = sand.u32 %s102, 1
        %s264 = scalar_lea.sflag [#allocation4], %s263
        %s265 = sand.u32 %s102, 1
        %s266 = smul.addr %s265, 160
        %s267 = scalar_lea.vmem [#allocation3], %s266
        // Predicated region
        $region41: #{stacked_lstm_cell_forward.1} parent=39 // pred_check
          %p268 = pneg %p115
        $region42: #{stacked_lstm_cell_forward.1} parent=39 // pred_check_branch
          %270 = sbr.rel (%p268) target = $region44
        $region43: #{stacked_lstm_cell_forward.1} parent=39 // pred_region
          %271 = dma.done %s264, 2560
        $region44: #{stacked_lstm_cell_forward.1} parent=39 // pred_fallthru
          _
        %p272 = pneg %p37
        %p273 = pneg %p34
        %p274 = scmp.lt.s32.totalorder %s21, 1
        %s275 = scalar_select %p274, %s21, 1
        %s276 = smul.addr %s275, 8
        %s277 = scalar_lea.vmem %s1, %s276
        %p278 = pneg %p63
        %p279 = pneg %p60
        %p280 = scmp.lt.s32.totalorder %s21, 1
        %s281 = scalar_select %p280, %s21, 1
        %s282 = smul.addr %s281, 8
        %s283 = scalar_lea.vmem %s2, %s282
        %p284 = pneg %p89
        %p285 = pneg %p86
        %s286 = sand.u32 %s102, 1
        %s287 = scalar_lea.sflag [#allocation4], %s286
        %s288 = sand.u32 %s102, 1
        %s289 = smul.addr %s288, 160
        %s290 = scalar_lea.vmem [#allocation3], %s289
        %p291 = pneg %p115
        %p292 = pneg %p112
        %p293 = scmp.lt.s32.totalorder %s21, 1
        %s294 = scalar_select %p293, %s21, 1
        %s295 = scalar_lea.vmem %s4, %s294
        %p296 = pneg %p141
        %p297 = pneg %p138
        %p298 = pneg %p167
        %p299 = pneg %p164
        %p300 = scmp.lt.s32.totalorder %s21, 1
        %s301 = scalar_select %p300, %s21, 1
        %s302 = smul.addr %s301, 8
        %s303 = scalar_lea.vmem %s5, %s302
        %p304 = pneg %p193
        %p305 = pneg %p190
        %p306 = scmp.lt.s32.totalorder %s21, 1
        %s307 = scalar_select %p306, %s21, 1
        %s308 = smul.addr %s307, 8
        %s309 = scalar_lea.vmem %s6, %s308
        %p310 = scmp.lt.s32.totalorder %s21, 1
        %s311 = scalar_select %p310, %s21, 1
        %s312 = smul.addr %s311, 8
        %s313 = scalar_lea.vmem %s1, %s312
        %p314 = scmp.lt.s32.totalorder %s21, 1
        %s315 = scalar_select %p314, %s21, 1
        %s316 = smul.addr %s315, 8
        %s317 = scalar_lea.vmem %s2, %s316
        %p318 = scmp.lt.s32.totalorder %s21, 1
        %s319 = scalar_select %p318, %s21, 1
        %s320 = scalar_lea.vmem %s4, %s319
        %p321 = scmp.lt.s32.totalorder %s21, 1
        %s322 = scalar_select %p321, %s21, 1
        %s323 = smul.addr %s322, 8
        %s324 = scalar_lea.vmem %s5, %s323
        %p325 = scmp.lt.s32.totalorder %s21, 1
        %s326 = scalar_select %p325, %s21, 1
        %s327 = smul.addr %s326, 8
        %s328 = scalar_lea.vmem %s6, %s327
        %p329 = scmp.eq.s32.totalorder %s21, 0
        // Predicated region
        $region45: #{stacked_lstm_cell_forward.1} parent=39 // pred_check
          %p330 = pneg %p329
        $region46: #{stacked_lstm_cell_forward.1} parent=39 // pred_check_branch
          %332 = sbr.rel (%p330) target = $region48
        $region47: #{stacked_lstm_cell_forward.1} parent=39 // pred_region
          %v333 = vld [vmem:[%s0] sm:$0xff]
          %334 = vst [vmem:[#allocation2] sm:$0xff] %v333
        $region48: #{stacked_lstm_cell_forward.1} parent=39 // pred_fallthru
          _
        %v335 = vld [vmem:[%s313] sm:$0xff]
        %vm336 = vcmask 261120
        %337 = vst.msk [vmem:[#allocation2 + $0x8] sm:$0xff] %vm336, %v335
        %v338 = vld [vmem:[#allocation2] sm:$0xff]
        %v339 = vld [vmem:[#allocation2 + $0x8] sm:$0xff]
        %v340 = vld [vmem:[%s267] sm:$0xff]
        %v341 = vld [vmem:[%s267 + $0x8] sm:$0xff]
        %v342 = vld [vmem:[%s267 + $0x10] sm:$0xff]
        %v343 = vld [vmem:[%s267 + $0x18] sm:$0xff]
        %v344 = vld [vmem:[%s267 + $0x20] sm:$0xff]
        %v345 = vld [vmem:[%s267 + $0x28] sm:$0xff]
        %v346 = vld [vmem:[%s267 + $0x30] sm:$0xff]
        %v347 = vld [vmem:[%s267 + $0x38] sm:$0xff]
        %v348 = vld [vmem:[%s267 + $0x40] sm:$0xff]
        %v349 = vld [vmem:[%s267 + $0x48] sm:$0xff]
        %v350 = vld [vmem:[%s267 + $0x50] sm:$0xff]
        %v351 = vld [vmem:[%s267 + $0x58] sm:$0xff]
        %v352 = vld [vmem:[%s267 + $0x60] sm:$0xff]
        %v353 = vld [vmem:[%s267 + $0x68] sm:$0xff]
        %v354 = vld [vmem:[%s267 + $0x70] sm:$0xff]
        %v355 = vld [vmem:[%s267 + $0x78] sm:$0xff]
        %v356 = vld [vmem:[%s267 + $0x80] sm:$0xff]
        %v357 = vld [vmem:[%s267 + $0x88] sm:$0xff]
        %v358 = vld [vmem:[%s267 + $0x90] sm:$0xff]
        %v359 = vld [vmem:[%s267 + $0x98] sm:$0xff]
        %v360 = vld [vmem:[%s320] sm:$0x1]
        %v362 = vlaneseq
        %v363 = vshrl.u32 %v362, 7
        %v364 = vsub.s32 0, %v363
        %v365 = vrot.slane %v360, %v364
        %v368 = vsel %vm336, %v339, 0
        %370 = vmatprep.subr.mxu0 0.0
        %371 = vmatpush1.msra.mxu0 %v355
        %372 = vmatprep.subr.mxu0 0.0
        %373 = vmatpush1.msra.mxu0 %v354
        %374 = vmatprep.subr.mxu0 0.0
        %375 = vmatpush1.msra.mxu0 %v353
        %376 = vmatprep.subr.mxu0 0.0
        %377 = vmatpush1.msra.mxu0 %v352
        %378 = vmatprep.subr.mxu0 0.0
        %379 = vmatpush1.msra.mxu0 %v351
        %380 = vmatprep.subr.mxu0 0.0
        %381 = vmatpush1.msra.mxu0 %v350
        %382 = vmatprep.subr.mxu0 0.0
        %383 = vmatpush1.msra.mxu0 %v349
        %384 = vmatprep.subr.mxu0 0.0
        %385 = vmatpush1.msra.mxu0 %v348
        %386 = vmatprep.subr.mxu0 0.0
        %387 = vmatpush1.msra.mxu0 %v347
        %388 = vmatprep.subr.mxu0 0.0
        %389 = vmatpush1.msra.mxu0 %v346
        %390 = vmatprep.subr.mxu0 0.0
        %391 = vmatpush1.msra.mxu0 %v345
        %392 = vmatprep.subr.mxu0 0.0
        %393 = vmatpush1.msra.mxu0 %v344
        %394 = vmatprep.subr.mxu0 0.0
        %395 = vmatpush1.msra.mxu0 %v343
        %396 = vmatprep.subr.mxu0 0.0
        %397 = vmatpush1.msra.mxu0 %v342
        %398 = vmatprep.subr.mxu0 0.0
        %399 = vmatpush1.msra.mxu0 %v341
        %400 = vmatprep.subr.mxu0 0.0
        %401 = vmatpush1.msra.mxu0 %v340
        %402 = vmatprep.subr.mxu0 0.0
        %403 = vmatpush2.msra.mxu0 0.0
        %404 = vmatprep.subr.mxu0 0.0
        %405 = vmatpush2.msra.mxu0 0.0
        %406 = vmatprep.subr.mxu0 0.0
        %407 = vmatpush2.msra.mxu0 0.0
        %408 = vmatprep.subr.mxu0 0.0
        %409 = vmatpush2.msra.mxu0 0.0
        %410 = vmatprep.subr.mxu0 0.0
        %411 = vmatpush2.msra.mxu0 0.0
        %412 = vmatprep.subr.mxu0 0.0
        %413 = vmatpush2.msra.mxu0 0.0
        %414 = vmatprep.subr.mxu0 0.0
        %415 = vmatpush2.msra.mxu0 0.0
        %416 = vmatprep.subr.mxu0 0.0
        %417 = vmatpush2.msra.mxu0 0.0
        %418 = vmatprep.subr.mxu0 0.0
        %419 = vmatpush2.msra.mxu0 0.0
        %420 = vmatprep.subr.mxu0 0.0
        %421 = vmatpush2.msra.mxu0 0.0
        %422 = vmatprep.subr.mxu0 0.0
        %423 = vmatpush2.msra.mxu0 0.0
        %424 = vmatprep.subr.mxu0 0.0
        %425 = vmatpush2.msra.mxu0 0.0
        %426 = vmatprep.subr.mxu0 0.0
        %427 = vmatpush2.msra.mxu0 %v359
        %428 = vmatprep.subr.mxu0 0.0
        %429 = vmatpush2.msra.mxu0 %v358
        %430 = vmatprep.subr.mxu0 0.0
        %431 = vmatpush2.msra.mxu0 %v357
        %432 = vmatprep.subr.mxu0 0.0
        %433 = vmatpush2.msra.mxu0 %v356
        %434 = vmatprep.mubr.f32.mxu0 %v368
        %435 = vmatmul.mubr.f32.gmra.mxu0 %v338
        %v436 = vpop.f32.mrf.mxu0
        %v437 = vadd.f32 %v365, %v436
        %v438 = vpop.f32.mrf.mxu0
        %439 = vdwg.mxu0
        %v440 = vtanh.pop %v437
        %v441 = vadd.f32 %v440, 1.0
        %v442 = vmul.f32 %v441, 0.5
        %v443 = vld [vmem:[%s317] sm:$0xff]
        %445 = vrot.lane.b32.xlu0 %v443, 32
        %v446 = vpop.permute.xlu0 %445
        %v448 = vmul.f32 %v442, %v446
        %450 = vrot.lane.b32.xlu0 %v440, 64
        %v451 = vpop.permute.xlu0 %450
        %v453 = vmul.f32 %v442, %v451
        %455 = vrot.lane.b32.xlu0 %v453, 32
        %v456 = vpop.permute.xlu0 %455
        %v458 = vadd.f32 %v448, %v456
        %v459 = vtanh.pop %v458
        %461 = vrot.lane.b32.xlu0 %v459, 64
        %v462 = vpop.permute.xlu0 %461
        %v464 = vmul.f32 %v442, %v462
        %466 = vrot.lane.b32.xlu0 %v458, 96
        %v467 = vpop.permute.xlu0 %466
        %469 = vst.msk [vmem:[%s328] sm:$0xff] %vm336, %v467
        %471 = vrot.lane.b32.xlu0 %v464, 32
        %v472 = vpop.permute.xlu0 %471
        %474 = vst.msk [vmem:[%s324] sm:$0xff] %vm336, %v472
        %s475 = sadd.s32 %s21, 1
        %p476 = scmp.lt.s32.totalorder %s475, 2
        // Predicated region
        $region49: #{stacked_lstm_cell_forward.1} parent=39 // pred_check
          %p477 = pneg %p476
        $region50: #{stacked_lstm_cell_forward.1} parent=39 // pred_check_branch
          %479 = sbr.rel (%p477) target = $region52
        $region51: #{stacked_lstm_cell_forward.1} parent=39 // pred_region
          %480 = vst.msk [vmem:[#allocation2] sm:$0xff] %vm336, %v472
        $region52: #{stacked_lstm_cell_forward.1} parent=39 // pred_fallthru
          _
        %p481 = scmp.lt.s32.totalorder %s21, 1
        %s482 = scalar_select %p481, %s21, 1
        %s483 = smul.addr %s482, 8
        %s484 = scalar_lea.vmem %s5, %s483
        %p485 = scmp.lt.s32.totalorder %s21, 1
        %s486 = scalar_select %p485, %s21, 1
        %s487 = smul.addr %s486, 8
        %s488 = scalar_lea.vmem %s6, %s487
        // Predicated region
        $region53: #{stacked_lstm_cell_forward.1} parent=39 // pred_check
          %p489 = pneg %p164
        $region54: #{stacked_lstm_cell_forward.1} parent=39 // pred_check_branch
          %491 = sbr.rel (%p489) target = $region56
        $region55: #{stacked_lstm_cell_forward.1} parent=39 // pred_region
          _
        $region56: #{stacked_lstm_cell_forward.1} parent=39 // pred_fallthru
          _
        // Predicated region
        $region57: #{stacked_lstm_cell_forward.1} parent=39 // pred_check
          %p492 = pneg %p190
        $region58: #{stacked_lstm_cell_forward.1} parent=39 // pred_check_branch
          %494 = sbr.rel (%p492) target = $region60
        $region59: #{stacked_lstm_cell_forward.1} parent=39 // pred_region
          _
        $region60: #{stacked_lstm_cell_forward.1} parent=39 // pred_fallthru
          _
      $region40: #{stacked_lstm_cell_forward.1} parent=5 // pred_fallthru
        _
      %p495 = scmp.le.s32.totalorder 2, %s16
      // Predicated region
      $region61: #{stacked_lstm_cell_forward.1} parent=5 // pred_check
        %p496 = pneg %p495
      $region62: #{stacked_lstm_cell_forward.1} parent=5 // pred_check_branch
        %498 = sbr.rel (%p496) target = $region64
      $region63: #{stacked_lstm_cell_forward.1} parent=5 // pred_region
        %s499 = ssub.s32 %s16, 2
        // Predicated region
        $region65: #{stacked_lstm_cell_forward.1} parent=63 // pred_check
          %p500 = pneg %p170
        $region66: #{stacked_lstm_cell_forward.1} parent=63 // pred_check_branch
          %502 = sbr.rel (%p500) target = $region68
        $region67: #{stacked_lstm_cell_forward.1} parent=63 // pred_region
          %p503 = scmp.lt.s32.totalorder %s22, 1
          %s504 = scalar_select %p503, %s22, 1
          %s505 = smul.addr %s504, 8
          %s506 = scalar_lea.vmem %s5, %s505
        $region68: #{stacked_lstm_cell_forward.1} parent=63 // pred_fallthru
          _
        // Predicated region
        $region69: #{stacked_lstm_cell_forward.1} parent=63 // pred_check
          %p507 = pneg %p196
        $region70: #{stacked_lstm_cell_forward.1} parent=63 // pred_check_branch
          %509 = sbr.rel (%p507) target = $region72
        $region71: #{stacked_lstm_cell_forward.1} parent=63 // pred_region
          %p510 = scmp.lt.s32.totalorder %s22, 1
          %s511 = scalar_select %p510, %s22, 1
          %s512 = smul.addr %s511, 8
          %s513 = scalar_lea.vmem %s6, %s512
        $region72: #{stacked_lstm_cell_forward.1} parent=63 // pred_fallthru
          _
      $region64: #{stacked_lstm_cell_forward.1} parent=5 // pred_fallthru
        _
    $region6: #{stacked_lstm_cell_forward.1} parent=1 // loop_footer
      %s20 = sadd.s32 1, %s16
    $region7: #{stacked_lstm_cell_forward.1} parent=1 // loop_footer_branch
      %15 = sbr.rel target = $region3
    $region8: #{stacked_lstm_cell_forward.1} parent=1 // loop_exit
      _
    %514 = vsyncpa [#allocation4], 1
    %s515 = scalar_lea.sflag [#allocation4], 1
    %516 = vsyncpa %s515, 1

</llo_original>
